<compile_context>
chip_gen: v7x
topology: tpu7x:2x2x1
jax: 0.10.0
libtpu: 0.0.40
codegen_flags: <defaults>
</compile_context>

<pallas_src>
import functools

import jax
import jax.numpy as jnp
from jax.experimental import pallas as pl
from jax.experimental.pallas import tpu as pltpu


def _round_up(x, m):
    return (x + m - 1) // m * m


def _sublane_multiple(dtype):
    # Minimum second-to-last block dim for packed layouts: 8 (f32), 16 (bf16), 32 (8-bit).
    return max(8, 32 // jnp.dtype(dtype).itemsize)


def _silu(x):
    return x * jax.nn.sigmoid(x)


def pick_mlp_tiles(intermediate_size, dtype=jnp.float32):
    """Per-generation (tm, ti, vmem_limit_bytes) defaults, clamped to the problem size."""
    kind = jax.devices()[0].device_kind.lower()
    if "v6" in kind:
        tm, ti, vmem = 1024, 512, 100 * 1024 * 1024
    elif "7x" in kind or "v7" in kind:
        tm, ti, vmem = 512, 256, 48 * 1024 * 1024          # 64 MiB physical VMEM
    elif "v5e" in kind or "v5 lite" in kind or "v5lite" in kind:
        tm, ti, vmem = 256, 1024, 96 * 1024 * 1024
    else:
        tm, ti, vmem = 256, 512, 48 * 1024 * 1024
    # ti must be a multiple of 128 (lane width of the gate/up block last dim) unless it
    # covers the whole (padded) intermediate dim.
    ti = min(ti, _round_up(intermediate_size, 128))
    del dtype  # reserved for future fp8/int8 tiling tweaks
    return tm, ti, vmem


def prepare_mlp_weights(gate_w, up_w, down_w, *, ti, dtype=None):
    """Pad the intermediate dim to a multiple of `ti` (and optionally cast).

    Call ONCE at model load; the padded weights are then reused by every forward call so
    no per-step weight rewrite / extra HBM traffic happens inside the jitted path.
    Weights are stored (in_features, out_features), i.e. the transpose of nn.Linear.weight.
    Zero-padded intermediate columns contribute silu(0) * 0 = 0, so padding is exact.
    """
    I = gate_w.shape[1]
    I_pad = _round_up(I, ti)
    if I_pad != I:
        gate_w = jnp.pad(gate_w, ((0, 0), (0, I_pad - I)))
        up_w = jnp.pad(up_w, ((0, 0), (0, I_pad - I)))
        down_w = jnp.pad(down_w, ((0, I_pad - I), (0, 0)))
    if dtype is not None:
        gate_w = gate_w.astype(dtype)
        up_w = up_w.astype(dtype)
        down_w = down_w.astype(dtype)
    return gate_w, up_w, down_w


def mlp_kernel(x_ref, gate_ref, up_ref, down_ref, o_ref, acc_ref):
    # x_ref:    (tm, H)      input row tile (constant across the k axis)
    # gate_ref: (H, ti)      gate_proj weight tile for current I-block
    # up_ref:   (H, ti)      up_proj weight tile for current I-block
    # down_ref: (ti, H)      down_proj weight tile for current I-block
    # o_ref:    (tm, H)      output row tile (resident across the k axis)
    # acc_ref:  (tm, H) f32  accumulator scratch
    k = pl.program_id(1)
    x = x_ref[...]

    # Two MXU passes (same cycles as one fused (H, 2*ti) pass), f32 accumulate.
    g = jnp.dot(x, gate_ref[...], preferred_element_type=jnp.float32)
    u = jnp.dot(x, up_ref[...], preferred_element_type=jnp.float32)
    h = (g * jax.nn.sigmoid(g)) * u  # SwiGLU elementwise in f32 (VPU/EUP)

    # Partial down-projection for this I tile.
    partial = jnp.dot(h.astype(x.dtype), down_ref[...], preferred_element_type=jnp.float32)

    @pl.when(k == 0)
    def _first():
        acc_ref[...] = partial          # direct write: no zero-init store + reload

    @pl.when(k > 0)
    def _accumulate():
        acc_ref[...] += partial

    @pl.when(k == pl.num_programs(1) - 1)
    def _finalize():
        o_ref[...] = acc_ref[...].astype(o_ref.dtype)


@functools.partial(jax.jit, static_argnames=("tm", "ti", "vmem_limit_bytes"))
def mlp_forward(x, gate_w, up_w, down_w, *, tm, ti, vmem_limit_bytes):
    """x: (B, S, H).  Weights must come from prepare_mlp_weights (padded to `ti`)."""
    B, S, H = x.shape
    I_pad = gate_w.shape[1]
    assert I_pad % ti == 0, "weights must be padded with prepare_mlp_weights(ti=...)"
    M = B * S

    # Clamp the row tile for small inputs, respecting dtype sublane packing.
    sub = _sublane_multiple(x.dtype)
    tm = min(tm, _round_up(M, sub))
    M_pad = _round_up(M, tm)

    x2d = x.reshape(M, H)
    if M_pad != M:
        x2d = jnp.pad(x2d, ((0, M_pad - M), (0, 0)))

    n_row_tiles = M_pad // tm
    nti = I_pad // ti
    grid = (n_row_tiles, nti)

    w_itemsize = jnp.dtype(gate_w.dtype).itemsize
    x_itemsize = jnp.dtype(x.dtype).itemsize
    cost = pl.CostEstimate(
        flops=6 * M_pad * H * I_pad,            # 4*M*H*I (gate+up) + 2*M*I*H (down)
        transcendentals=M_pad * I_pad,          # sigmoid
        bytes_accessed=(
            M_pad * H * x_itemsize                                        # x read
            + M_pad * H * x_itemsize                                      # out write
            + n_row_tiles * (gate_w.size + up_w.size + down_w.size) * w_itemsize
        ),
    )

    out2d = pl.pallas_call(
        mlp_kernel,
        out_shape=jax.ShapeDtypeStruct((M_pad, H), x.dtype),
        grid_spec=pltpu.PrefetchScalarGridSpec(
            num_scalar_prefetch=0,
            grid=grid,
            in_specs=[
                pl.BlockSpec((tm, H), lambda i, k: (i, 0)),     # x row tile
                pl.BlockSpec((H, ti), lambda i, k: (0, k)),     # gate_proj tile
                pl.BlockSpec((H, ti), lambda i, k: (0, k)),     # up_proj tile
                pl.BlockSpec((ti, H), lambda i, k: (k, 0)),     # down_proj tile
            ],
            out_specs=pl.BlockSpec((tm, H), lambda i, k: (i, 0)),
            scratch_shapes=[pltpu.VMEM((tm, H), jnp.float32)],
        ),
        compiler_params=pltpu.CompilerParams(
            dimension_semantics=("parallel", "arbitrary"),
            vmem_limit_bytes=vmem_limit_bytes,
        ),
        cost_estimate=cost,
    )(x2d, gate_w, up_w, down_w)

    return out2d[:M].reshape(B, S, H)


def reference_mlp(x, gate_w, up_w, down_w):
    g = jnp.einsum("bsh,hi->bsi", x, gate_w)
    u = jnp.einsum("bsh,hi->bsi", x, up_w)
    return jnp.einsum("bsi,ih->bsh", _silu(g) * u, down_w)


if __name__ == "__main__":
    # Small shapes consistent with the module: hidden_size=32, intermediate_size=64,
    # hidden_act="silu" (Baichuan default), batch=2, seq=8.
    B, S, H, I = 2, 8, 32, 64

    key = jax.random.PRNGKey(0)
    kx, kg, ku, kd = jax.random.split(key, 4)

    x = jax.random.normal(kx, (B, S, H), dtype=jnp.float32)
    # Deterministic "Kaiming-uniform-like" init, stored as (in, out).
    gate_w = jax.random.uniform(kg, (H, I), jnp.float32, -1.0, 1.0) / jnp.sqrt(H)
    up_w = jax.random.uniform(ku, (H, I), jnp.float32, -1.0, 1.0) / jnp.sqrt(H)
    down_w = jax.random.uniform(kd, (I, H), jnp.float32, -1.0, 1.0) / jnp.sqrt(I)

    ref = reference_mlp(x, gate_w, up_w, down_w)

    # ---- f32 path (strict correctness check) ----
    tm, ti, vmem = pick_mlp_tiles(I, dtype=jnp.float32)
    gate_p, up_p, down_p = prepare_mlp_weights(gate_w, up_w, down_w, ti=ti)  # once, at load
    out = mlp_forward(x, gate_p, up_p, down_p, tm=tm, ti=ti, vmem_limit_bytes=vmem)
    out = jax.block_until_ready(out)
    assert out.shape == (B, S, H)
    assert jnp.allclose(out, ref, atol=1e-5, rtol=1e-5), "f32 mismatch vs reference"

    # ---- bf16 path (halves HBM weight streaming; f32 accumulate inside the kernel) ----
    tm_b, ti_b, vmem_b = pick_mlp_tiles(I, dtype=jnp.bfloat16)
    gate_b, up_b, down_b = prepare_mlp_weights(gate_w, up_w, down_w, ti=ti_b,
                                               dtype=jnp.bfloat16)
    out_b = mlp_forward(x.astype(jnp.bfloat16), gate_b, up_b, down_b,
                        tm=tm_b, ti=ti_b, vmem_limit_bytes=vmem_b)
    out_b = jax.block_until_ready(out_b)
    assert jnp.allclose(out_b.astype(jnp.float32), ref, atol=0.1, rtol=0.1), \
        "bf16 mismatch vs reference"

    print("KERNEL_OK")
</pallas_src>

<mosaic_0001>
module attributes {stable_mosaic.version = 11 : i64} {
  func.func @mlp_kernel(%arg0: i32, %arg1: i32, %arg2: memref<16x32xf32, #tpu.memory_space<vmem>>, %arg3: memref<32x128xf32, #tpu.memory_space<vmem>>, %arg4: memref<32x128xf32, #tpu.memory_space<vmem>>, %arg5: memref<128x32xf32, #tpu.memory_space<vmem>>, %arg6: memref<16x32xf32, #tpu.memory_space<vmem>>, %arg7: memref<16x32xf32, #tpu.memory_space<vmem>>) attributes {dimension_semantics = [#tpu.dimension_semantics<parallel>, #tpu.dimension_semantics<arbitrary>], iteration_bounds = array<i64: 1, 1>, scalar_prefetch = 0 : i64, scratch_operands = 1 : i64, tpu.core_type = #tpu.core_type<tc>, window_params = [{transform_indices = @transform_0, window_bounds = array<i64: 16, 32>}, {transform_indices = @transform_1, window_bounds = array<i64: 32, 128>}, {transform_indices = @transform_2, window_bounds = array<i64: 32, 128>}, {transform_indices = @transform_3, window_bounds = array<i64: 128, 32>}, {transform_indices = @transform_4, window_bounds = array<i64: 16, 32>}]} {
    %c0 = arith.constant 0 : index
    %c0_0 = arith.constant 0 : index
    %0 = vector.load %arg2[%c0, %c0_0] : memref<16x32xf32, #tpu.memory_space<vmem>>, vector<16x32xf32>
    %c0_1 = arith.constant 0 : index
    %c0_2 = arith.constant 0 : index
    %1 = vector.load %arg3[%c0_1, %c0_2] : memref<32x128xf32, #tpu.memory_space<vmem>>, vector<32x128xf32>
    %cst = arith.constant dense<0.000000e+00> : vector<16x128xf32>
    %2 = tpu.matmul %0, %1, %cst {dimension_numbers = #tpu.dot_dimension_numbers<[1], [0], [0], [1], [0, 0, 1, 1], [], []>} : vector<16x32xf32>, vector<32x128xf32>, vector<16x128xf32> -> vector<16x128xf32>
    %c0_3 = arith.constant 0 : index
    %c0_4 = arith.constant 0 : index
    %3 = vector.load %arg4[%c0_3, %c0_4] : memref<32x128xf32, #tpu.memory_space<vmem>>, vector<32x128xf32>
    %cst_5 = arith.constant dense<0.000000e+00> : vector<16x128xf32>
    %4 = tpu.matmul %0, %3, %cst_5 {dimension_numbers = #tpu.dot_dimension_numbers<[1], [0], [0], [1], [0, 0, 1, 1], [], []>} : vector<16x32xf32>, vector<32x128xf32>, vector<16x128xf32> -> vector<16x128xf32>
    %5 = arith.negf %2 : vector<16x128xf32>
    %6 = math.exp %5 : vector<16x128xf32>
    %cst_6 = arith.constant 1.000000e+00 : f32
    %7 = vector.broadcast %cst_6 : f32 to vector<16x128xf32>
    %8 = arith.addf %7, %6 : vector<16x128xf32>
    %9 = arith.divf %7, %8 : vector<16x128xf32>
    %10 = arith.mulf %2, %9 : vector<16x128xf32>
    %11 = arith.mulf %10, %4 : vector<16x128xf32>
    %c0_7 = arith.constant 0 : index
    %c0_8 = arith.constant 0 : index
    %12 = vector.load %arg5[%c0_7, %c0_8] : memref<128x32xf32, #tpu.memory_space<vmem>>, vector<128x32xf32>
    %cst_9 = arith.constant dense<0.000000e+00> : vector<16x32xf32>
    %13 = tpu.matmul %11, %12, %cst_9 {dimension_numbers = #tpu.dot_dimension_numbers<[1], [0], [0], [1], [0, 0, 1, 1], [], []>} : vector<16x128xf32>, vector<128x32xf32>, vector<16x32xf32> -> vector<16x32xf32>
    %c0_i32 = arith.constant 0 : i32
    %14 = arith.cmpi eq, %arg1, %c0_i32 : i32
    %15 = arith.extui %14 : i1 to i32
    %c0_i32_10 = arith.constant 0 : i32
    %16 = arith.cmpi ne, %15, %c0_i32_10 : i32
    scf.if %16 {
      %c0_15 = arith.constant 0 : index
      %c0_16 = arith.constant 0 : index
      %23 = vector.load %arg7[%c0_15, %c0_16] : memref<16x32xf32, #tpu.memory_space<vmem>>, vector<16x32xf32>
      tpu.vector_store %arg7[%c0_15, %c0_16], %13 {strides = array<i32>} : memref<16x32xf32, #tpu.memory_space<vmem>>, vector<16x32xf32>,
    } else {
    }
    %c0_i32_11 = arith.constant 0 : i32
    %17 = arith.cmpi sgt, %arg1, %c0_i32_11 : i32
    %18 = arith.extui %17 : i1 to i32
    %c0_i32_12 = arith.constant 0 : i32
    %19 = arith.cmpi ne, %18, %c0_i32_12 : i32
    scf.if %19 {
      %c0_15 = arith.constant 0 : index
      %c0_16 = arith.constant 0 : index
      %23 = vector.load %arg7[%c0_15, %c0_16] : memref<16x32xf32, #tpu.memory_space<vmem>>, vector<16x32xf32>
      %24 = arith.addf %23, %13 : vector<16x32xf32>
      %c0_17 = arith.constant 0 : index
      %c0_18 = arith.constant 0 : index
      %25 = vector.load %arg7[%c0_17, %c0_18] : memref<16x32xf32, #tpu.memory_space<vmem>>, vector<16x32xf32>
      tpu.vector_store %arg7[%c0_17, %c0_18], %24 {strides = array<i32>} : memref<16x32xf32, #tpu.memory_space<vmem>>, vector<16x32xf32>,
    } else {
    }
    %c0_i32_13 = arith.constant 0 : i32
    %20 = arith.cmpi eq, %arg1, %c0_i32_13 : i32
    %21 = arith.extui %20 : i1 to i32
    %c0_i32_14 = arith.constant 0 : i32
    %22 = arith.cmpi ne, %21, %c0_i32_14 : i32
    scf.if %22 {
      %c0_15 = arith.constant 0 : index
      %c0_16 = arith.constant 0 : index
      %23 = vector.load %arg7[%c0_15, %c0_16] : memref<16x32xf32, #tpu.memory_space<vmem>>, vector<16x32xf32>
      %c0_17 = arith.constant 0 : index
      %c0_18 = arith.constant 0 : index
      %24 = vector.load %arg6[%c0_17, %c0_18] : memref<16x32xf32, #tpu.memory_space<vmem>>, vector<16x32xf32>
      tpu.vector_store %arg6[%c0_17, %c0_18], %23 {strides = array<i32>} : memref<16x32xf32, #tpu.memory_space<vmem>>, vector<16x32xf32>,
    } else {
    }
    return
  }
  func.func @transform_0(%arg0: i32, %arg1: i32) -> (i32, i32) {
    %c0_i32 = arith.constant 0 : i32
    %c0_i32_0 = arith.constant 0 : i32
    return %arg0, %c0_i32 : i32, i32
  }
  func.func @transform_1(%arg0: i32, %arg1: i32) -> (i32, i32) {
    %c0_i32 = arith.constant 0 : i32
    %c0_i32_0 = arith.constant 0 : i32
    return %c0_i32, %arg1 : i32, i32
  }
  func.func @transform_2(%arg0: i32, %arg1: i32) -> (i32, i32) {
    %c0_i32 = arith.constant 0 : i32
    %c0_i32_0 = arith.constant 0 : i32
    return %c0_i32, %arg1 : i32, i32
  }
  func.func @transform_3(%arg0: i32, %arg1: i32) -> (i32, i32) {
    %c0_i32 = arith.constant 0 : i32
    %c0_i32_0 = arith.constant 0 : i32
    return %arg1, %c0_i32 : i32, i32
  }
  func.func @transform_4(%arg0: i32, %arg1: i32) -> (i32, i32) {
    %c0_i32 = arith.constant 0 : i32
    %c0_i32_0 = arith.constant 0 : i32
    return %arg0, %c0_i32 : i32, i32
  }
}

</mosaic_0001>

<llo_original>
// kernel: mlp_forward.1
$region0: #{mlp_forward.1}
  #allocation0 [shape = 'u32[]', space=smem, size = 0x4, offset = 0x4, fixed_abs, tag = 'smem constant byte address 0x4 - core index']
  #allocation1 [shape = 'u32[144,128]{1,0:T(1,128)}', space=vmem, size = 0x12000, scoped, tag = 'internal scratch']
  #allocation2 [shape = 'f32[16,32]{1,0:T(8,128)}', space=vmem, size = 0x2000, scoped, tag = 'scratch operand']
  %s0 = inlined_call_operand.vmem [shape: f32[16,32], index: 0, kind: input, shape index: {}]
  %s1 = inlined_call_operand.vmem [shape: f32[32,128], index: 1, kind: input, shape index: {}]
  %s2 = inlined_call_operand.vmem [shape: f32[32,128], index: 2, kind: input, shape index: {}]
  %s3 = inlined_call_operand.vmem [shape: f32[128,32], index: 3, kind: input, shape index: {}]
  %s4 = inlined_call_operand.hbm [shape: f32[16,32], index: 4, kind: output, shape index: {}]
  %s5 = sld [smem:[#allocation0]]
  $region38: #{mlp_forward.1} parent=0
    _
  %s7 = ssub.s32 1, %s5
  %s8 = scalar_select 0, %s7, %s5
  $region1: #{mlp_forward.1} parent=0
    #allocation3 [shape = 'u8[8192]{0}', space=vmem, size = 0x2000, scoped, tag = 'output window, operand 0, single buffered']
    #allocation4 [shape = 's32[1]{0}', space=sflag, size = 0x4, scoped, tag = 'scoped memory for mlp_forward.1']
    %9 = vsyncpa [#allocation4], 0
    // Predicated region
    $region2: #{mlp_forward.1} parent=1 // pred_check
      _
    $region3: #{mlp_forward.1} parent=1 // pred_check_branch
      %11 = sbr.rel (0) target = $region5
    $region4: #{mlp_forward.1} parent=1 // pred_region
      _
    $region5: #{mlp_forward.1} parent=1 // pred_fallthru
      _
    // Predicated region
    $region6: #{mlp_forward.1} parent=1 // pred_check
      _
    $region7: #{mlp_forward.1} parent=1 // pred_check_branch
      %13 = sbr.rel (0) target = $region9
    $region8: #{mlp_forward.1} parent=1 // pred_region
      _
    $region9: #{mlp_forward.1} parent=1 // pred_fallthru
      _
    // Predicated region
    $region10: #{mlp_forward.1} parent=1 // pred_check
      _
    $region11: #{mlp_forward.1} parent=1 // pred_check_branch
      %15 = sbr.rel (0) target = $region13
    $region12: #{mlp_forward.1} parent=1 // pred_region
      _
    $region13: #{mlp_forward.1} parent=1 // pred_fallthru
      _
    // Predicated region
    $region14: #{mlp_forward.1} parent=1 // pred_check
      _
    $region15: #{mlp_forward.1} parent=1 // pred_check_branch
      %17 = sbr.rel (0) target = $region17
    $region16: #{mlp_forward.1} parent=1 // pred_region
      _
    $region17: #{mlp_forward.1} parent=1 // pred_fallthru
      _
    %v18 = vld [vmem:[%s0] sm:$0xff]
    %v19 = vld [vmem:[%s0 + $0x8] sm:$0xff]
    %v20 = vld [vmem:[%s1] sm:$0xff]
    %v21 = vld [vmem:[%s1 + $0x8] sm:$0xff]
    %v22 = vld [vmem:[%s1 + $0x10] sm:$0xff]
    %v23 = vld [vmem:[%s1 + $0x18] sm:$0xff]
    %vm24 = vcmask 261120
    %v26 = vsel %vm24, %v18, 0
    %v29 = vsel %vm24, %v19, 0
    %31 = vmatprep.subr.mxu0 0.0
    %32 = vmatpush1.msra.mxu0 %v20
    %33 = vmatprep.subr.mxu0 0.0
    %34 = vmatpush1.msra.mxu0 %v21
    %35 = vmatprep.subr.mxu0 0.0
    %36 = vmatpush1.msra.mxu0 %v22
    %37 = vmatprep.subr.mxu0 0.0
    %38 = vmatpush1.msra.mxu0 %v23
    %39 = vmatprep.subr.mxu0 0.0
    %40 = vmatpush1.msra.mxu0 0.0
    %41 = vmatprep.subr.mxu0 0.0
    %42 = vmatpush1.msra.mxu0 0.0
    %43 = vmatprep.subr.mxu0 0.0
    %44 = vmatpush1.msra.mxu0 0.0
    %45 = vmatprep.subr.mxu0 0.0
    %46 = vmatpush1.msra.mxu0 0.0
    %47 = vmatprep.subr.mxu0 0.0
    %48 = vmatpush1.msra.mxu0 0.0
    %49 = vmatprep.subr.mxu0 0.0
    %50 = vmatpush1.msra.mxu0 0.0
    %51 = vmatprep.subr.mxu0 0.0
    %52 = vmatpush1.msra.mxu0 0.0
    %53 = vmatprep.subr.mxu0 0.0
    %54 = vmatpush1.msra.mxu0 0.0
    %55 = vmatprep.subr.mxu0 0.0
    %56 = vmatpush1.msra.mxu0 0.0
    %57 = vmatprep.subr.mxu0 0.0
    %58 = vmatpush1.msra.mxu0 0.0
    %59 = vmatprep.subr.mxu0 0.0
    %60 = vmatpush1.msra.mxu0 0.0
    %61 = vmatprep.subr.mxu0 0.0
    %62 = vmatpush1.msra.mxu0 0.0
    %63 = vmatprep.subr.mxu0 0.0
    %64 = vmatpush1.msra.mxu0 0.0
    %65 = vmatprep.subr.mxu0 0.0
    %66 = vmatpush1.msra.mxu0 0.0
    %67 = vmatprep.subr.mxu0 0.0
    %68 = vmatpush1.msra.mxu0 0.0
    %69 = vmatprep.subr.mxu0 0.0
    %70 = vmatpush1.msra.mxu0 0.0
    %71 = vmatprep.subr.mxu0 0.0
    %72 = vmatpush1.msra.mxu0 0.0
    %73 = vmatprep.subr.mxu0 0.0
    %74 = vmatpush1.msra.mxu0 0.0
    %75 = vmatprep.subr.mxu0 0.0
    %76 = vmatpush1.msra.mxu0 0.0
    %77 = vmatprep.subr.mxu0 0.0
    %78 = vmatpush1.msra.mxu0 0.0
    %79 = vmatprep.subr.mxu0 0.0
    %80 = vmatpush1.msra.mxu0 0.0
    %81 = vmatprep.subr.mxu0 0.0
    %82 = vmatpush1.msra.mxu0 0.0
    %83 = vmatprep.subr.mxu0 0.0
    %84 = vmatpush1.msra.mxu0 0.0
    %85 = vmatprep.subr.mxu0 0.0
    %86 = vmatpush1.msra.mxu0 0.0
    %87 = vmatprep.subr.mxu0 0.0
    %88 = vmatpush1.msra.mxu0 0.0
    %89 = vmatprep.subr.mxu0 0.0
    %90 = vmatpush1.msra.mxu0 0.0
    %91 = vmatprep.subr.mxu0 0.0
    %92 = vmatpush1.msra.mxu0 0.0
    %93 = vmatprep.subr.mxu0 0.0
    %94 = vmatpush1.msra.mxu0 0.0
    %95 = vmatprep.mubr.f32.mxu0 0.0
    %96 = vmatmul.mubr.f32.gmra.mrb[0].mxu0 %v26
    %v97 = vpop.f32.mrb[0].mxu0
    %v98 = vadd.f32 0.0, %v97
    %v99 = vpop.f32.mrb[0].mxu0
    %100 = vmatprep.mubr.f32.mxu0 0.0
    %101 = vmatmul.mubr.f32.gmra.mrb[0].mxu0 %v29
    %v102 = vpop.f32.mrb[0].mxu0
    %v103 = vadd.f32 0.0, %v102
    %v104 = vpop.f32.mrb[0].mxu0
    %105 = vdwg.mxu0
    %v106 = vld [vmem:[%s2] sm:$0xff]
    %v107 = vld [vmem:[%s2 + $0x8] sm:$0xff]
    %v108 = vld [vmem:[%s2 + $0x10] sm:$0xff]
    %v109 = vld [vmem:[%s2 + $0x18] sm:$0xff]
    %110 = vmatprep.subr.mxu0 0.0
    %111 = vmatpush1.msra.mxu0 %v106
    %112 = vmatprep.subr.mxu0 0.0
    %113 = vmatpush1.msra.mxu0 %v107
    %114 = vmatprep.subr.mxu0 0.0
    %115 = vmatpush1.msra.mxu0 %v108
    %116 = vmatprep.subr.mxu0 0.0
    %117 = vmatpush1.msra.mxu0 %v109
    %118 = vmatprep.subr.mxu0 0.0
    %119 = vmatpush1.msra.mxu0 0.0
    %120 = vmatprep.subr.mxu0 0.0
    %121 = vmatpush1.msra.mxu0 0.0
    %122 = vmatprep.subr.mxu0 0.0
    %123 = vmatpush1.msra.mxu0 0.0
    %124 = vmatprep.subr.mxu0 0.0
    %125 = vmatpush1.msra.mxu0 0.0
    %126 = vmatprep.subr.mxu0 0.0
    %127 = vmatpush1.msra.mxu0 0.0
    %128 = vmatprep.subr.mxu0 0.0
    %129 = vmatpush1.msra.mxu0 0.0
    %130 = vmatprep.subr.mxu0 0.0
    %131 = vmatpush1.msra.mxu0 0.0
    %132 = vmatprep.subr.mxu0 0.0
    %133 = vmatpush1.msra.mxu0 0.0
    %134 = vmatprep.subr.mxu0 0.0
    %135 = vmatpush1.msra.mxu0 0.0
    %136 = vmatprep.subr.mxu0 0.0
    %137 = vmatpush1.msra.mxu0 0.0
    %138 = vmatprep.subr.mxu0 0.0
    %139 = vmatpush1.msra.mxu0 0.0
    %140 = vmatprep.subr.mxu0 0.0
    %141 = vmatpush1.msra.mxu0 0.0
    %142 = vmatprep.subr.mxu0 0.0
    %143 = vmatpush1.msra.mxu0 0.0
    %144 = vmatprep.subr.mxu0 0.0
    %145 = vmatpush1.msra.mxu0 0.0
    %146 = vmatprep.subr.mxu0 0.0
    %147 = vmatpush1.msra.mxu0 0.0
    %148 = vmatprep.subr.mxu0 0.0
    %149 = vmatpush1.msra.mxu0 0.0
    %150 = vmatprep.subr.mxu0 0.0
    %151 = vmatpush1.msra.mxu0 0.0
    %152 = vmatprep.subr.mxu0 0.0
    %153 = vmatpush1.msra.mxu0 0.0
    %154 = vmatprep.subr.mxu0 0.0
    %155 = vmatpush1.msra.mxu0 0.0
    %156 = vmatprep.subr.mxu0 0.0
    %157 = vmatpush1.msra.mxu0 0.0
    %158 = vmatprep.subr.mxu0 0.0
    %159 = vmatpush1.msra.mxu0 0.0
    %160 = vmatprep.subr.mxu0 0.0
    %161 = vmatpush1.msra.mxu0 0.0
    %162 = vmatprep.subr.mxu0 0.0
    %163 = vmatpush1.msra.mxu0 0.0
    %164 = vmatprep.subr.mxu0 0.0
    %165 = vmatpush1.msra.mxu0 0.0
    %166 = vmatprep.subr.mxu0 0.0
    %167 = vmatpush1.msra.mxu0 0.0
    %168 = vmatprep.subr.mxu0 0.0
    %169 = vmatpush1.msra.mxu0 0.0
    %170 = vmatprep.subr.mxu0 0.0
    %171 = vmatpush1.msra.mxu0 0.0
    %172 = vmatprep.subr.mxu0 0.0
    %173 = vmatpush1.msra.mxu0 0.0
    %174 = vmatprep.mubr.f32.mxu0 0.0
    %175 = vmatmul.mubr.f32.gmra.mrb[0].mxu0 %v26
    %v176 = vpop.f32.mrb[0].mxu0
    %v177 = vadd.f32 0.0, %v176
    %v178 = vpop.f32.mrb[0].mxu0
    %179 = vmatprep.mubr.f32.mxu0 0.0
    %180 = vmatmul.mubr.f32.gmra.mrb[0].mxu0 %v29
    %v181 = vpop.f32.mrb[0].mxu0
    %v182 = vadd.f32 0.0, %v181
    %v183 = vpop.f32.mrb[0].mxu0
    %184 = vdwg.mxu0
    %v185 = vxor.u32 %v98, 2147483648
    %v186 = vxor.u32 %v103, 2147483648
    %v187 = vmul.f32 %v185, 1.442695
    %v188 = vpow.pop %v187
    %v189 = vmul.f32 %v186, 1.442695
    %v190 = vpow.pop %v189
    %v191 = vadd.f32 %v188, 1.0
    %v192 = vadd.f32 %v190, 1.0
    %v193 = vrcp.pop %v191
    %v194 = vmul.f32 1.0, %v193
    %v195 = vrcp.pop %v192
    %v196 = vmul.f32 1.0, %v195
    %v197 = vmul.f32 %v98, %v194
    %v198 = vmul.f32 %v103, %v196
    %v199 = vmul.f32 %v197, %v177
    %v200 = vmul.f32 %v198, %v182
    %v201 = vld [vmem:[%s3] sm:$0xff]
    %v202 = vld [vmem:[%s3 + $0x8] sm:$0xff]
    %v203 = vld [vmem:[%s3 + $0x10] sm:$0xff]
    %v204 = vld [vmem:[%s3 + $0x18] sm:$0xff]
    %v205 = vld [vmem:[%s3 + $0x20] sm:$0xff]
    %v206 = vld [vmem:[%s3 + $0x28] sm:$0xff]
    %v207 = vld [vmem:[%s3 + $0x30] sm:$0xff]
    %v208 = vld [vmem:[%s3 + $0x38] sm:$0xff]
    %v209 = vld [vmem:[%s3 + $0x40] sm:$0xff]
    %v210 = vld [vmem:[%s3 + $0x48] sm:$0xff]
    %v211 = vld [vmem:[%s3 + $0x50] sm:$0xff]
    %v212 = vld [vmem:[%s3 + $0x58] sm:$0xff]
    %v213 = vld [vmem:[%s3 + $0x60] sm:$0xff]
    %v214 = vld [vmem:[%s3 + $0x68] sm:$0xff]
    %v215 = vld [vmem:[%s3 + $0x70] sm:$0xff]
    %v216 = vld [vmem:[%s3 + $0x78] sm:$0xff]
    %217 = vmatprep.subr.mxu0 0.0
    %218 = vmatpush1.msra.mxu0 %v201
    %219 = vmatprep.subr.mxu0 0.0
    %220 = vmatpush1.msra.mxu0 %v202
    %221 = vmatprep.subr.mxu0 0.0
    %222 = vmatpush1.msra.mxu0 %v203
    %223 = vmatprep.subr.mxu0 0.0
    %224 = vmatpush1.msra.mxu0 %v204
    %225 = vmatprep.subr.mxu0 0.0
    %226 = vmatpush1.msra.mxu0 %v205
    %227 = vmatprep.subr.mxu0 0.0
    %228 = vmatpush1.msra.mxu0 %v206
    %229 = vmatprep.subr.mxu0 0.0
    %230 = vmatpush1.msra.mxu0 %v207
    %231 = vmatprep.subr.mxu0 0.0
    %232 = vmatpush1.msra.mxu0 %v208
    %233 = vmatprep.subr.mxu0 0.0
    %234 = vmatpush1.msra.mxu0 %v209
    %235 = vmatprep.subr.mxu0 0.0
    %236 = vmatpush1.msra.mxu0 %v210
    %237 = vmatprep.subr.mxu0 0.0
    %238 = vmatpush1.msra.mxu0 %v211
    %239 = vmatprep.subr.mxu0 0.0
    %240 = vmatpush1.msra.mxu0 %v212
    %241 = vmatprep.subr.mxu0 0.0
    %242 = vmatpush1.msra.mxu0 %v213
    %243 = vmatprep.subr.mxu0 0.0
    %244 = vmatpush1.msra.mxu0 %v214
    %245 = vmatprep.subr.mxu0 0.0
    %246 = vmatpush1.msra.mxu0 %v215
    %247 = vmatprep.subr.mxu0 0.0
    %248 = vmatpush1.msra.mxu0 %v216
    %249 = vmatprep.subr.mxu0 0.0
    %250 = vmatpush1.msra.mxu0 0.0
    %251 = vmatprep.subr.mxu0 0.0
    %252 = vmatpush1.msra.mxu0 0.0
    %253 = vmatprep.subr.mxu0 0.0
    %254 = vmatpush1.msra.mxu0 0.0
    %255 = vmatprep.subr.mxu0 0.0
    %256 = vmatpush1.msra.mxu0 0.0
    %257 = vmatprep.subr.mxu0 0.0
    %258 = vmatpush1.msra.mxu0 0.0
    %259 = vmatprep.subr.mxu0 0.0
    %260 = vmatpush1.msra.mxu0 0.0
    %261 = vmatprep.subr.mxu0 0.0
    %262 = vmatpush1.msra.mxu0 0.0
    %263 = vmatprep.subr.mxu0 0.0
    %264 = vmatpush1.msra.mxu0 0.0
    %265 = vmatprep.subr.mxu0 0.0
    %266 = vmatpush1.msra.mxu0 0.0
    %267 = vmatprep.subr.mxu0 0.0
    %268 = vmatpush1.msra.mxu0 0.0
    %269 = vmatprep.subr.mxu0 0.0
    %270 = vmatpush1.msra.mxu0 0.0
    %271 = vmatprep.subr.mxu0 0.0
    %272 = vmatpush1.msra.mxu0 0.0
    %273 = vmatprep.subr.mxu0 0.0
    %274 = vmatpush1.msra.mxu0 0.0
    %275 = vmatprep.subr.mxu0 0.0
    %276 = vmatpush1.msra.mxu0 0.0
    %277 = vmatprep.subr.mxu0 0.0
    %278 = vmatpush1.msra.mxu0 0.0
    %279 = vmatprep.subr.mxu0 0.0
    %280 = vmatpush1.msra.mxu0 0.0
    %281 = vmatprep.mubr.f32.mxu0 0.0
    %282 = vmatmul.mubr.f32.gmra.mrb[0].mxu0 %v199
    %v283 = vpop.f32.mrb[0].mxu0
    %v284 = vadd.f32 0.0, %v283
    %v285 = vpop.f32.mrb[0].mxu0
    %286 = vmatprep.mubr.f32.mxu0 0.0
    %287 = vmatmul.mubr.f32.gmra.mrb[0].mxu0 %v200
    %v288 = vpop.f32.mrb[0].mxu0
    %v289 = vadd.f32 0.0, %v288
    %v290 = vpop.f32.mrb[0].mxu0
    %291 = vdwg.mxu0
    %p292 = scmp.eq.s32.totalorder 0, 0
    // Predicated region
    $region18: #{mlp_forward.1} parent=1 // pred_check
      %p293 = pneg %p292
    $region19: #{mlp_forward.1} parent=1 // pred_check_branch
      %295 = sbr.rel (%p293) target = $region21
    $region20: #{mlp_forward.1} parent=1 // pred_region
      %296 = vst.msk [vmem:[#allocation2] sm:$0xff] %vm24, %v284
      %297 = vst.msk [vmem:[#allocation2 + $0x8] sm:$0xff] %vm24, %v289
    $region21: #{mlp_forward.1} parent=1 // pred_fallthru
      _
    %p298 = scmp.gt.s32.totalorder 0, 0
    // Predicated region
    $region22: #{mlp_forward.1} parent=1 // pred_check
      %p299 = pneg %p298
    $region23: #{mlp_forward.1} parent=1 // pred_check_branch
      %301 = sbr.rel (%p299) target = $region25
    $region24: #{mlp_forward.1} parent=1 // pred_region
      %v302 = vld [vmem:[#allocation2] sm:$0xff]
      %v303 = vld [vmem:[#allocation2 + $0x8] sm:$0xff]
      %v304 = vadd.f32 %v302, %v284
      %v305 = vadd.f32 %v303, %v289
      %306 = vst.msk [vmem:[#allocation2] sm:$0xff] %vm24, %v304
      %307 = vst.msk [vmem:[#allocation2 + $0x8] sm:$0xff] %vm24, %v305
    $region25: #{mlp_forward.1} parent=1 // pred_fallthru
      _
    // Predicated region
    $region26: #{mlp_forward.1} parent=1 // pred_check
      %p308 = pneg %p292
    $region27: #{mlp_forward.1} parent=1 // pred_check_branch
      %310 = sbr.rel (%p308) target = $region29
    $region28: #{mlp_forward.1} parent=1 // pred_region
      %v311 = vld [vmem:[#allocation2] sm:$0xff]
      %v312 = vld [vmem:[#allocation2 + $0x8] sm:$0xff]
      %313 = vst.msk [vmem:[#allocation3] sm:$0xff] %vm24, %v311
      %314 = vst.msk [vmem:[#allocation3 + $0x8] sm:$0xff] %vm24, %v312
    $region29: #{mlp_forward.1} parent=1 // pred_fallthru
      _
    // Predicated region
    $region30: #{mlp_forward.1} parent=1 // pred_check
      _
    $region31: #{mlp_forward.1} parent=1 // pred_check_branch
      %316 = sbr.rel (0) target = $region33
    $region32: #{mlp_forward.1} parent=1 // pred_region
      %s318 = ssub.s32 256, 256
      %319 = vsyncadd [#allocation4], %s318
      %s320 = sshll.u32 [#allocation3], 4
      %s321 = int_to_ptr.vmem [resolvable:$true] %s320
      %326 = dma.vmem_to_hbm [thread:$0]  %s321, 256, %s4, [#allocation4], 128, 128, 8
    $region33: #{mlp_forward.1} parent=1 // pred_fallthru
      _
    // Predicated region
    $region34: #{mlp_forward.1} parent=1 // pred_check
      _
    $region35: #{mlp_forward.1} parent=1 // pred_check_branch
      %328 = sbr.rel (0) target = $region37
    $region36: #{mlp_forward.1} parent=1 // pred_region
      %329 = dma.done [#allocation4], 256
    $region37: #{mlp_forward.1} parent=1 // pred_fallthru
      _
    %330 = vsyncpa [#allocation4], 1

</llo_original>
